<compile_context>
chip_gen: v7x
topology: tpu7x:2x2x1
jax: 0.10.0
libtpu: 0.0.40
codegen_flags: <defaults>
</compile_context>

<pallas_src>
import jax
import jax.numpy as jnp
from jax.experimental import pallas as pl
from jax.experimental.pallas import tpu as pltpu


_GT_CAP = 8   # max groups per block (bounds static unroll / live-range growth)


# ---------------------------------------------------------------------------
# Kernel
# ---------------------------------------------------------------------------
def _make_kernel(gt: int, st: int, k: int, pack: bool, mxu_dtype):
    """Kernel over one (Gt, St, K) x (Gt, K, D) block pair."""

    def kernel(x1_ref, x2_ref, o_ref):
        # --- softmax elementwise path once over the whole (Gt*St, K) tile ---
        # (leading-dim merge is layout-free: St is sublane aligned).  Keeps
        # vregs full instead of Gt tiny XLU reductions / EUP pushes.
        x = x1_ref[...].reshape(gt * st, k).astype(jnp.float32)
        m = jnp.max(x, axis=-1, keepdims=True)            # (Gt*St, 1) f32
        e = jnp.exp(x - m)                                # (Gt*St, K) f32
        denom = jnp.sum(e, axis=-1, keepdims=True)        # (Gt*St, 1) f32
        inv = pl.reciprocal(denom, approx=False)          # exact; EUP slot
        e = e.astype(mxu_dtype)

        # --- per-group clean 2-D MXU dots, deferred normalization -----------
        outs = []
        for g in range(gt):                               # static unroll (<= _GT_CAP)
            eg = e[g * st:(g + 1) * st, :]                # (St, K), sublane aligned
            vg = x2_ref[g].astype(mxu_dtype)              # (K, D)
            acc = jnp.dot(eg, vg, preferred_element_type=jnp.float32)
            out_g = acc * inv[g * st:(g + 1) * st, :]     # (St, D) f32
            if pack:
                outs.append(out_g)
            else:
                o_ref[g] = out_g.astype(o_ref.dtype)

        if pack:
            # One unmasked, lane-dense (St, Gt*D) store instead of Gt masked
            # partial stores (frees the single vst slot, esp. on v5e).
            o_ref[0] = jnp.concatenate(outs, axis=-1).astype(o_ref.dtype)

    return kernel


# ---------------------------------------------------------------------------
# Hardware-aware budgets
# ---------------------------------------------------------------------------
def _vmem_capacity_bytes() -> int:
    try:
        return int(pltpu.get_tpu_info().vmem_capacity_bytes)
    except Exception:
        return 64 * 1024 * 1024          # conservative: v7x per-TC VMEM


# ---------------------------------------------------------------------------
# Wrapper
# ---------------------------------------------------------------------------
def our_softmax_matmul(x1, x2, *, dim=-1, mxu_dtype=None):
    """Forward of OurSoftmaxMatMul: softmax(x1, dim=-1) @ x2.

    x1: [..., S, K], x2: [..., K, D] with matching leading batch dims.
    mxu_dtype: optional lower-precision MXU operand dtype (e.g. jnp.bfloat16)
    for f32 inputs; accumulation stays f32.  Default keeps native precision.
    """
    assert dim in (-1, x1.ndim - 1), "only softmax over the last axis supported"
    # TODO(synk): general `dim` would need a wrapper-side transpose.
    assert x1.shape[:-2] == x2.shape[:-2], "batch dims must match"
    assert x1.shape[-1] == x2.shape[-2], "contraction dims must match"

    batch_dims = x1.shape[:-2]
    S, K = x1.shape[-2], x1.shape[-1]
    D = x2.shape[-1]
    G = 1
    for b in batch_dims:
        G *= b
    out_dtype = x1.dtype

    x1f = x1.reshape(G, S, K)
    x2f = x2.reshape(G, K, D)

    b_x1 = jnp.dtype(x1f.dtype).itemsize
    b_x2 = jnp.dtype(x2f.dtype).itemsize
    b_out = jnp.dtype(out_dtype).itemsize
    mxu = jnp.dtype(x2f.dtype) if mxu_dtype is None else jnp.dtype(mxu_dtype)
    b_mxu = mxu.itemsize

    # ---- generation-aware budgets ----------------------------------------
    vmem_cap = _vmem_capacity_bytes()
    vmem_limit = (vmem_cap * 3) // 4                 # headroom for double buffers
    if vmem_cap <= 64 * 1024 * 1024:                 # v7x-class (64 MiB / TC)
        block_budget = 4 * 1024 * 1024
    else:                                            # v5e / v6e (128 MiB)
        block_budget = 16 * 1024 * 1024

    # sublane packing: f32 -> 8 rows/vreg, bf16 -> 16, int8/fp8 -> 32
    sub = max(8, 32 // b_x1)

    # Pad S so every S tile is sublane-aligned (padded rows sliced off below).
    S_pad = ((S + sub - 1) // sub) * sub
    if S_pad != S:
        x1f = jnp.pad(x1f, ((0, 0), (0, S_pad - S), (0, 0)))

    def block_bytes(gt, st):
        # Inputs/output blocks + in-kernel f32 temporaries.
        tmp = gt * st * K * 4                        # e (f32)
        if b_x1 != 4:
            tmp += gt * st * K * 4                   # f32 upcast of x1 tile
        if b_mxu != 4:
            tmp += gt * st * K * b_mxu               # MXU-dtype copy of e
        tmp += 2 * st * D * 4                        # interleaved f32 accumulators
        return (gt * st * K * b_x1
                + gt * K * D * b_x2                  # x2 block (K not tiled)
                + gt * st * D * b_out
                + tmp)

    # ---- sequence tile: largest sublane-aligned divisor of S_pad in budget --
    st = sub
    for cand in range(sub, S_pad + 1, sub):
        if S_pad % cand == 0 and block_bytes(1, cand) <= block_budget:
            st = cand
    if block_bytes(1, st) > block_budget and block_bytes(1, st) > vmem_limit // 3:
        # TODO(synk): flash-style K-tiled online-softmax path for huge K.
        raise NotImplementedError(
            "softmax@matmul block does not fit VMEM (needs K streaming)")
    n_s = S_pad // st

    # ---- group tile: only grow Gt once St covers S; prefer lane-dense packs
    # (Gt*D multiple of 128); keep both TensorCores busy (grid >= 2 programs).
    gt = 1
    if st == S_pad and G > 1:
        gt_cap = min(G, _GT_CAP)
        if n_s == 1:
            gt_cap = min(gt_cap, max(1, G // 2))     # 2-TC load-balance guard
        best_score = (-1, -1)
        for cand in range(1, gt_cap + 1):
            if G % cand != 0 or block_bytes(cand, st) > block_budget:
                continue
            lane_dense = 1 if (cand * D) % 128 == 0 else 0
            score = (lane_dense, cand)
            if score > best_score:
                best_score = score
                gt = cand
    g_outer = G // gt

    # Lane-dense packed output only when it yields unmasked full-width stores
    # AND the wrapper-side unpack pass is cheap relative to reading x1.
    pack = (D < 128 and gt > 1 and (gt * D) % 128 == 0
            and 2 * D * b_out <= K * b_x1)

    in_specs = [
        pl.BlockSpec((gt, st, K), lambda go, si: (go, si, 0)),
        pl.BlockSpec((gt, K, D), lambda go, si: (go, 0, 0)),   # resident across si
    ]
    if pack:
        out_shape = jax.ShapeDtypeStruct((g_outer, S_pad, gt * D), out_dtype)
        out_spec = pl.BlockSpec((1, st, gt * D), lambda go, si: (go, si, 0))
    else:
        out_shape = jax.ShapeDtypeStruct((G, S_pad, D), out_dtype)
        out_spec = pl.BlockSpec((gt, st, D), lambda go, si: (go, si, 0))

    cost = pl.CostEstimate(
        flops=2 * G * S_pad * K * D,
        transcendentals=G * S_pad * K,
        bytes_accessed=(x1f.size * b_x1 + x2f.size * b_x2
                        + G * S_pad * D * b_out),
    )

    out = pl.pallas_call(
        _make_kernel(gt, st, K, pack, mxu),
        out_shape=out_shape,
        grid=(g_outer, n_s),
        in_specs=in_specs,
        out_specs=out_spec,
        compiler_params=pltpu.CompilerParams(
            dimension_semantics=("parallel", "parallel"),
            vmem_limit_bytes=vmem_limit,
        ),
        cost_estimate=cost,
    )(x1f, x2f)

    if pack:
        # (g_outer, S_pad, Gt*D) -> (G, S_pad, D); gated so this extra output
        # pass only happens when it is small relative to the x1 traffic.
        out = (out.reshape(g_outer, S_pad, gt, D)
                  .transpose(0, 2, 1, 3)
                  .reshape(G, S_pad, D))
    if S_pad != S:
        out = out[:, :S, :]
    return out.reshape(*batch_dims, S, D)


# ---------------------------------------------------------------------------
# Reference + self-test
# ---------------------------------------------------------------------------
def _reference(x1, x2):
    return jnp.einsum("...sk,...kd->...sd", jax.nn.softmax(x1, axis=-1), x2)


if __name__ == "__main__":
    key = jax.random.PRNGKey(0)
    k1, k2, k3, k4 = jax.random.split(key, 4)

    # Test 1: attention-style small shape (unpacked-output path).
    B, H, S, D = 2, 4, 8, 32
    x1 = jax.random.normal(k1, (B, H, S, S), dtype=jnp.float32)   # scores
    x2 = jax.random.normal(k2, (B, H, S, D), dtype=jnp.float32)   # values
    y = our_softmax_matmul(x1, x2)
    jax.block_until_ready(y)
    y_ref = _reference(x1, x2)
    assert y.shape == (B, H, S, D)
    # Tolerance covers the MXU's default f32 path (bf16-truncated operands).
    assert jnp.allclose(y, y_ref, atol=5e-3, rtol=5e-3), "mismatch (test 1)"

    # Test 2: exercises the lane-dense packed-output path (Gt*D == 128).
    B2, H2, S2, K2, D2 = 2, 2, 64, 256, 64
    a1 = jax.random.normal(k3, (B2, H2, S2, K2), dtype=jnp.float32)
    a2 = jax.random.normal(k4, (B2, H2, K2, D2), dtype=jnp.float32)
    z = our_softmax_matmul(a1, a2)
    jax.block_until_ready(z)
    z_ref = _reference(a1, a2)
    assert z.shape == (B2, H2, S2, D2)
    assert jnp.allclose(z, z_ref, atol=5e-3, rtol=5e-3), "mismatch (test 2)"

    print("KERNEL_OK")
</pallas_src>

<mosaic_0001>
module attributes {stable_mosaic.version = 11 : i64} {
  func.func @kernel(%arg0: i32, %arg1: i32, %arg2: memref<4x8x8xf32, #tpu.memory_space<vmem>>, %arg3: memref<4x8x32xf32, #tpu.memory_space<vmem>>, %arg4: memref<4x8x32xf32, #tpu.memory_space<vmem>>) attributes {dimension_semantics = [#tpu.dimension_semantics<parallel>, #tpu.dimension_semantics<parallel>], iteration_bounds = array<i64: 2, 1>, scalar_prefetch = 0 : i64, scratch_operands = 0 : i64, tpu.core_type = #tpu.core_type<tc>, window_params = [{transform_indices = @transform_0, window_bounds = array<i64: 4, 8, 8>}, {transform_indices = @transform_1, window_bounds = array<i64: 4, 8, 32>}, {transform_indices = @transform_2, window_bounds = array<i64: 4, 8, 32>}]} {
    %c0 = arith.constant 0 : index
    %c0_0 = arith.constant 0 : index
    %c0_1 = arith.constant 0 : index
    %0 = vector.load %arg2[%c0, %c0_0, %c0_1] : memref<4x8x8xf32, #tpu.memory_space<vmem>>, vector<4x8x8xf32>
    %1 = vector.shape_cast %0 : vector<4x8x8xf32> to vector<32x8xf32>
    %cst = arith.constant dense<0xFF800000> : vector<32xf32>
    %2 = vector.multi_reduction <maximumf>, %1, %cst [1] : vector<32x8xf32> to vector<32xf32>
    %3 = vector.shape_cast %2 : vector<32xf32> to vector<32x1xf32>
    %4 = vector.broadcast %3 : vector<32x1xf32> to vector<32x8xf32>
    %5 = arith.subf %1, %4 : vector<32x8xf32>
    %6 = math.exp %5 : vector<32x8xf32>
    %cst_2 = arith.constant dense<0.000000e+00> : vector<32xf32>
    %7 = vector.multi_reduction <add>, %6, %cst_2 [1] : vector<32x8xf32> to vector<32xf32>
    %8 = vector.shape_cast %7 : vector<32xf32> to vector<32x1xf32>
    %9 = tpu.reciprocal %8 : vector<32x1xf32> -> vector<32x1xf32>
    %10 = vector.extract_strided_slice %6 {offsets = [0, 0], sizes = [8, 8], strides = [1, 1]} : vector<32x8xf32> to vector<8x8xf32>
    %c0_3 = arith.constant 0 : index
    %c0_4 = arith.constant 0 : index
    %c0_5 = arith.constant 0 : index
    %11 = vector.load %arg3[%c0_3, %c0_4, %c0_5] : memref<4x8x32xf32, #tpu.memory_space<vmem>>, vector<1x8x32xf32>
    %12 = vector.shape_cast %11 : vector<1x8x32xf32> to vector<8x32xf32>
    %cst_6 = arith.constant dense<0.000000e+00> : vector<8x32xf32>
    %13 = tpu.matmul %10, %12, %cst_6 {dimension_numbers = #tpu.dot_dimension_numbers<[1], [0], [0], [1], [0, 0, 1, 1], [], []>} : vector<8x8xf32>, vector<8x32xf32>, vector<8x32xf32> -> vector<8x32xf32>
    %14 = vector.extract_strided_slice %9 {offsets = [0, 0], sizes = [8, 1], strides = [1, 1]} : vector<32x1xf32> to vector<8x1xf32>
    %15 = vector.broadcast %14 : vector<8x1xf32> to vector<8x32xf32>
    %16 = arith.mulf %13, %15 : vector<8x32xf32>
    %c0_7 = arith.constant 0 : index
    %c0_8 = arith.constant 0 : index
    %c0_9 = arith.constant 0 : index
    %17 = vector.load %arg4[%c0_7, %c0_8, %c0_9] : memref<4x8x32xf32, #tpu.memory_space<vmem>>, vector<1x8x32xf32>
    %18 = vector.shape_cast %17 : vector<1x8x32xf32> to vector<8x32xf32>
    %19 = vector.shape_cast %16 : vector<8x32xf32> to vector<1x8x32xf32>
    tpu.vector_store %arg4[%c0_7, %c0_8, %c0_9], %19 {strides = array<i32>} : memref<4x8x32xf32, #tpu.memory_space<vmem>>, vector<1x8x32xf32>,
    %20 = vector.extract_strided_slice %6 {offsets = [8, 0], sizes = [8, 8], strides = [1, 1]} : vector<32x8xf32> to vector<8x8xf32>
    %c1 = arith.constant 1 : index
    %c0_10 = arith.constant 0 : index
    %c0_11 = arith.constant 0 : index
    %21 = vector.load %arg3[%c1, %c0_10, %c0_11] : memref<4x8x32xf32, #tpu.memory_space<vmem>>, vector<1x8x32xf32>
    %22 = vector.shape_cast %21 : vector<1x8x32xf32> to vector<8x32xf32>
    %cst_12 = arith.constant dense<0.000000e+00> : vector<8x32xf32>
    %23 = tpu.matmul %20, %22, %cst_12 {dimension_numbers = #tpu.dot_dimension_numbers<[1], [0], [0], [1], [0, 0, 1, 1], [], []>} : vector<8x8xf32>, vector<8x32xf32>, vector<8x32xf32> -> vector<8x32xf32>
    %24 = vector.extract_strided_slice %9 {offsets = [8, 0], sizes = [8, 1], strides = [1, 1]} : vector<32x1xf32> to vector<8x1xf32>
    %25 = vector.broadcast %24 : vector<8x1xf32> to vector<8x32xf32>
    %26 = arith.mulf %23, %25 : vector<8x32xf32>
    %c1_13 = arith.constant 1 : index
    %c0_14 = arith.constant 0 : index
    %c0_15 = arith.constant 0 : index
    %27 = vector.load %arg4[%c1_13, %c0_14, %c0_15] : memref<4x8x32xf32, #tpu.memory_space<vmem>>, vector<1x8x32xf32>
    %28 = vector.shape_cast %27 : vector<1x8x32xf32> to vector<8x32xf32>
    %29 = vector.shape_cast %26 : vector<8x32xf32> to vector<1x8x32xf32>
    tpu.vector_store %arg4[%c1_13, %c0_14, %c0_15], %29 {strides = array<i32>} : memref<4x8x32xf32, #tpu.memory_space<vmem>>, vector<1x8x32xf32>,
    %30 = vector.extract_strided_slice %6 {offsets = [16, 0], sizes = [8, 8], strides = [1, 1]} : vector<32x8xf32> to vector<8x8xf32>
    %c2 = arith.constant 2 : index
    %c0_16 = arith.constant 0 : index
    %c0_17 = arith.constant 0 : index
    %31 = vector.load %arg3[%c2, %c0_16, %c0_17] : memref<4x8x32xf32, #tpu.memory_space<vmem>>, vector<1x8x32xf32>
    %32 = vector.shape_cast %31 : vector<1x8x32xf32> to vector<8x32xf32>
    %cst_18 = arith.constant dense<0.000000e+00> : vector<8x32xf32>
    %33 = tpu.matmul %30, %32, %cst_18 {dimension_numbers = #tpu.dot_dimension_numbers<[1], [0], [0], [1], [0, 0, 1, 1], [], []>} : vector<8x8xf32>, vector<8x32xf32>, vector<8x32xf32> -> vector<8x32xf32>
    %34 = vector.extract_strided_slice %9 {offsets = [16, 0], sizes = [8, 1], strides = [1, 1]} : vector<32x1xf32> to vector<8x1xf32>
    %35 = vector.broadcast %34 : vector<8x1xf32> to vector<8x32xf32>
    %36 = arith.mulf %33, %35 : vector<8x32xf32>
    %c2_19 = arith.constant 2 : index
    %c0_20 = arith.constant 0 : index
    %c0_21 = arith.constant 0 : index
    %37 = vector.load %arg4[%c2_19, %c0_20, %c0_21] : memref<4x8x32xf32, #tpu.memory_space<vmem>>, vector<1x8x32xf32>
    %38 = vector.shape_cast %37 : vector<1x8x32xf32> to vector<8x32xf32>
    %39 = vector.shape_cast %36 : vector<8x32xf32> to vector<1x8x32xf32>
    tpu.vector_store %arg4[%c2_19, %c0_20, %c0_21], %39 {strides = array<i32>} : memref<4x8x32xf32, #tpu.memory_space<vmem>>, vector<1x8x32xf32>,
    %40 = vector.extract_strided_slice %6 {offsets = [24, 0], sizes = [8, 8], strides = [1, 1]} : vector<32x8xf32> to vector<8x8xf32>
    %c3 = arith.constant 3 : index
    %c0_22 = arith.constant 0 : index
    %c0_23 = arith.constant 0 : index
    %41 = vector.load %arg3[%c3, %c0_22, %c0_23] : memref<4x8x32xf32, #tpu.memory_space<vmem>>, vector<1x8x32xf32>
    %42 = vector.shape_cast %41 : vector<1x8x32xf32> to vector<8x32xf32>
    %cst_24 = arith.constant dense<0.000000e+00> : vector<8x32xf32>
    %43 = tpu.matmul %40, %42, %cst_24 {dimension_numbers = #tpu.dot_dimension_numbers<[1], [0], [0], [1], [0, 0, 1, 1], [], []>} : vector<8x8xf32>, vector<8x32xf32>, vector<8x32xf32> -> vector<8x32xf32>
    %44 = vector.extract_strided_slice %9 {offsets = [24, 0], sizes = [8, 1], strides = [1, 1]} : vector<32x1xf32> to vector<8x1xf32>
    %45 = vector.broadcast %44 : vector<8x1xf32> to vector<8x32xf32>
    %46 = arith.mulf %43, %45 : vector<8x32xf32>
    %c3_25 = arith.constant 3 : index
    %c0_26 = arith.constant 0 : index
    %c0_27 = arith.constant 0 : index
    %47 = vector.load %arg4[%c3_25, %c0_26, %c0_27] : memref<4x8x32xf32, #tpu.memory_space<vmem>>, vector<1x8x32xf32>
    %48 = vector.shape_cast %47 : vector<1x8x32xf32> to vector<8x32xf32>
    %49 = vector.shape_cast %46 : vector<8x32xf32> to vector<1x8x32xf32>
    tpu.vector_store %arg4[%c3_25, %c0_26, %c0_27], %49 {strides = array<i32>} : memref<4x8x32xf32, #tpu.memory_space<vmem>>, vector<1x8x32xf32>,
    return
  }
  func.func @transform_0(%arg0: i32, %arg1: i32) -> (i32, i32, i32) {
    %c0_i32 = arith.constant 0 : i32
    %c0_i32_0 = arith.constant 0 : i32
    return %arg0, %arg1, %c0_i32 : i32, i32, i32
  }
  func.func @transform_1(%arg0: i32, %arg1: i32) -> (i32, i32, i32) {
    %c0_i32 = arith.constant 0 : i32
    %c0_i32_0 = arith.constant 0 : i32
    %c0_i32_1 = arith.constant 0 : i32
    return %arg0, %c0_i32, %c0_i32_0 : i32, i32, i32
  }
  func.func @transform_2(%arg0: i32, %arg1: i32) -> (i32, i32, i32) {
    %c0_i32 = arith.constant 0 : i32
    %c0_i32_0 = arith.constant 0 : i32
    return %arg0, %arg1, %c0_i32 : i32, i32, i32
  }
}

</mosaic_0001>

<llo_original>
// kernel: tpu_custom_call.1
$region0: #{tpu_custom_call.1}
  #allocation0 [shape = 'u32[]', space=smem, size = 0x4, offset = 0x4, fixed_abs, tag = 'smem constant byte address 0x4 - core index']
  #allocation1 [shape = 'u32[144,128]{1,0:T(1,128)}', space=vmem, size = 0x12000, scoped, tag = 'internal scratch']
  %s0 = inlined_call_operand.hbm [shape: f32[8,8,8], index: 0, kind: input, shape index: {}]
  %s1 = inlined_call_operand.hbm [shape: f32[8,8,32], index: 1, kind: input, shape index: {}]
  %s2 = inlined_call_operand.hbm [shape: f32[8,8,32], index: 2, kind: output, shape index: {}]
  %s3 = sld [smem:[#allocation0]]
  $region49: #{tpu_custom_call.1} parent=0
    _
  %s5 = ssub.s32 1, %s3
  %s6 = scalar_select 0, %s5, %s3
  $region1: #{tpu_custom_call.1} parent=0
    #allocation2 [shape = 'u8[32768]{0}', space=vmem, size = 0x8000, scoped, tag = 'input window, operand 0']
    #allocation3 [shape = 's32[2]{0}', space=sflag, size = 0x8, scoped, tag = 'scoped memory for tpu_custom_call.1']
    #allocation4 [shape = 's32[2]{0}', space=sflag, size = 0x8, scoped, tag = 'scoped memory for tpu_custom_call.1']
    #allocation5 [shape = 'u8[32768]{0}', space=vmem, size = 0x8000, scoped, tag = 'input window, operand 1']
    #allocation6 [shape = 's32[2]{0}', space=sflag, size = 0x8, scoped, tag = 'scoped memory for tpu_custom_call.1']
    #allocation7 [shape = 'u8[32768]{0}', space=vmem, size = 0x8000, scoped, tag = 'output window, operand 0']
    %7 = vsyncpa [#allocation3], 0
    %s8 = scalar_lea.sflag [#allocation3], 1
    %9 = vsyncpa %s8, 0
    %10 = vsyncpa [#allocation6], 0
    %s11 = scalar_lea.sflag [#allocation6], 1
    %12 = vsyncpa %s11, 0
    %13 = vsyncpa [#allocation4], 0
    %s14 = scalar_lea.sflag [#allocation4], 1
    %15 = vsyncpa %s14, 0
    loop: start=0, step=1, limit=4
    $region2: #{tpu_custom_call.1} parent=1 // loop_pre_header
      _
    $region3: #{tpu_custom_call.1} parent=1 // loop_header
      %s17 = sphi 0, %s21
      %p18 = scmp.ge.s32.totalorder %s17, 4
      %s24 = sphi 0, %s36
      %s25 = sphi 0, %s32
      %s26 = sphi 0, %s24
      %s27 = sphi 0, %s25
      %s28 = sphi 0, %s26
      %s29 = sphi 0, %s27
      %s41 = sphi 0, %s43
      %s44 = sphi 0, %s41
      %s45 = sphi 0, %s44
      %s61 = sphi 0, %s45
      %s67 = sphi 0, %s69
      %s70 = sphi 0, %s67
      %s71 = sphi 0, %s70
      %s87 = sphi 0, %s71
      %s95 = sphi 0, %s97
      %s98 = sphi 0, %s95
      %s99 = sphi 0, %s98
      %s115 = sphi 0, %s99
    $region4: #{tpu_custom_call.1} parent=1 // loop_header_branch
      %20 = sbr.rel (%p18) target = $region8
    $region5: #{tpu_custom_call.1} parent=1 // loop_body
      %s22 = ssub.s32 %s17, 1
      %s23 = ssub.s32 %s17, 2
      %s30 = sadd.s32 1, %s25
      %p31 = scmp.ge.s32.totalorder %s30, 1
      %s32 = scalar_select %p31, 0, %s30
      %s33 = sadd.s32 1, %s24
      %s34 = scalar_select %p31, %s33, %s24
      %p35 = scmp.ge.s32.totalorder %s34, 2
      %s36 = scalar_select %p35, 0, %s34
      %s37 = ssub.s32 %s24, %s36
      %s38 = ssub.s32 %s25, %s32
      %s39 = sor.u32 %s37, %s38
      %p40 = scmp.eq.s32.totalorder %s39, 0
      %s42 = sadd.s32 %s41, 1
      %s43 = scalar_select %p40, %s41, %s42
      %p46 = pneg %p40
      %p47 = scmp.eq.s32.totalorder %s17, 1
      %p48 = por %p46, %p47
      %p49 = scmp.ne.s32.totalorder %s41, %s44
      %p50 = scmp.eq.s32.totalorder %s17, 0
      %p51 = por %p49, %p50
      %p52 = scmp.ne.s32.totalorder %s41, %s44
      %p53 = scmp.eq.s32.totalorder %s22, 1
      %p54 = por %p52, %p53
      %p55 = scmp.ne.s32.totalorder %s44, %s45
      %p56 = scmp.eq.s32.totalorder %s22, 0
      %p57 = por %p55, %p56
      %p58 = scmp.ne.s32.totalorder %s44, %s45
      %p59 = scmp.eq.s32.totalorder %s23, 1
      %p60 = por %p58, %p59
      %p62 = scmp.ne.s32.totalorder %s45, %s61
      %p63 = scmp.eq.s32.totalorder %s23, 0
      %p64 = por %p62, %p63
      %s65 = ssub.s32 %s24, %s36
      %p66 = scmp.eq.s32.totalorder %s65, 0
      %s68 = sadd.s32 %s67, 1
      %s69 = scalar_select %p66, %s67, %s68
      %p72 = pneg %p66
      %p73 = scmp.eq.s32.totalorder %s17, 1
      %p74 = por %p72, %p73
      %p75 = scmp.ne.s32.totalorder %s67, %s70
      %p76 = scmp.eq.s32.totalorder %s17, 0
      %p77 = por %p75, %p76
      %p78 = scmp.ne.s32.totalorder %s67, %s70
      %p79 = scmp.eq.s32.totalorder %s22, 1
      %p80 = por %p78, %p79
      %p81 = scmp.ne.s32.totalorder %s70, %s71
      %p82 = scmp.eq.s32.totalorder %s22, 0
      %p83 = por %p81, %p82
      %p84 = scmp.ne.s32.totalorder %s70, %s71
      %p85 = scmp.eq.s32.totalorder %s23, 1
      %p86 = por %p84, %p85
      %p88 = scmp.ne.s32.totalorder %s71, %s87
      %p89 = scmp.eq.s32.totalorder %s23, 0
      %p90 = por %p88, %p89
      %s91 = ssub.s32 %s24, %s36
      %s92 = ssub.s32 %s25, %s32
      %s93 = sor.u32 %s91, %s92
      %p94 = scmp.eq.s32.totalorder %s93, 0
      %s96 = sadd.s32 %s95, 1
      %s97 = scalar_select %p94, %s95, %s96
      %p100 = pneg %p94
      %p101 = scmp.eq.s32.totalorder %s17, 1
      %p102 = por %p100, %p101
      %p103 = scmp.ne.s32.totalorder %s95, %s98
      %p104 = scmp.eq.s32.totalorder %s17, 0
      %p105 = por %p103, %p104
      %p106 = scmp.ne.s32.totalorder %s95, %s98
      %p107 = scmp.eq.s32.totalorder %s22, 1
      %p108 = por %p106, %p107
      %p109 = scmp.ne.s32.totalorder %s98, %s99
      %p110 = scmp.eq.s32.totalorder %s22, 0
      %p111 = por %p109, %p110
      %p112 = scmp.ne.s32.totalorder %s98, %s99
      %p113 = scmp.eq.s32.totalorder %s23, 1
      %p114 = por %p112, %p113
      %p116 = scmp.ne.s32.totalorder %s99, %s115
      %p117 = scmp.eq.s32.totalorder %s23, 0
      %p118 = por %p116, %p117
      %p119 = scmp.le.s32.totalorder 1, %s17
      %p120 = scmp.lt.s32.totalorder %s17, 3
      %p121 = pnand %p119, %p120
      %p122 = pneg %p121
      // Predicated region
      $region9: #{tpu_custom_call.1} parent=5 // pred_check
        _
      $region10: #{tpu_custom_call.1} parent=5 // pred_check_branch
        %124 = sbr.rel (%p121) target = $region12
      $region11: #{tpu_custom_call.1} parent=5 // pred_region
        %s125 = ssub.s32 %s17, 1
      $region12: #{tpu_custom_call.1} parent=5 // pred_fallthru
        _
      %p126 = scmp.lt.s32.totalorder %s17, 2
      // Predicated region
      $region13: #{tpu_custom_call.1} parent=5 // pred_check
        %p127 = pneg %p126
      $region14: #{tpu_custom_call.1} parent=5 // pred_check_branch
        %129 = sbr.rel (%p127) target = $region16
      $region15: #{tpu_custom_call.1} parent=5 // pred_region
        // Predicated region
        $region17: #{tpu_custom_call.1} parent=15 // pred_check
          %p130 = pneg %p51
        $region18: #{tpu_custom_call.1} parent=15 // pred_check_branch
          %132 = sbr.rel (%p130) target = $region20
        $region19: #{tpu_custom_call.1} parent=15 // pred_region
          %s133 = sand.u32 %s41, 1
          %s134 = scalar_lea.sflag [#allocation3], %s133
          %s135 = sand.u32 %s41, 1
          %s136 = smul.addr %s135, 32
          %s137 = scalar_lea.vmem [#allocation2], %s136
          %s138 = smul.u32 4, %s24
          %s140 = ssub.s32 512, 512
          %141 = vsyncadd %s134, %s140
          %s142 = sadd.s32 %s25, %s138
          %s143 = smul.addr %s142, 128
          %s144 = scalar_lea.hbm %s0, %s143
          %s145 = sshll.u32 %s137, 4
          %s146 = int_to_ptr.vmem [resolvable:$true] %s145
          %151 = dma.hbm_to_vmem [thread:$0]  %s144, 512, %s146, %s134, 128, 128, 8
        $region20: #{tpu_custom_call.1} parent=15 // pred_fallthru
          _
        // Predicated region
        $region21: #{tpu_custom_call.1} parent=15 // pred_check
          %p152 = pneg %p77
        $region22: #{tpu_custom_call.1} parent=15 // pred_check_branch
          %154 = sbr.rel (%p152) target = $region24
        $region23: #{tpu_custom_call.1} parent=15 // pred_region
          %s155 = sand.u32 %s67, 1
          %s156 = scalar_lea.sflag [#allocation6], %s155
          %s157 = sand.u32 %s67, 1
          %s158 = smul.addr %s157, 32
          %s159 = scalar_lea.vmem [#allocation5], %s158
          %s160 = smul.u32 4, %s24
          %s162 = ssub.s32 512, 512
          %163 = vsyncadd %s156, %s162
          %s164 = smul.addr %s160, 128
          %s165 = scalar_lea.hbm %s1, %s164
          %s166 = sshll.u32 %s159, 4
          %s167 = int_to_ptr.vmem [resolvable:$true] %s166
          %172 = dma.hbm_to_vmem [thread:$0]  %s165, 512, %s167, %s156, 128, 128, 8
        $region24: #{tpu_custom_call.1} parent=15 // pred_fallthru
          _
      $region16: #{tpu_custom_call.1} parent=5 // pred_fallthru
        _
      %p173 = scmp.le.s32.totalorder 1, %s17
      %p174 = scmp.lt.s32.totalorder %s17, 3
      %p175 = pnand %p173, %p174
      %p176 = pneg %p175
      // Predicated region
      $region25: #{tpu_custom_call.1} parent=5 // pred_check
        _
      $region26: #{tpu_custom_call.1} parent=5 // pred_check_branch
        %178 = sbr.rel (%p175) target = $region28
      $region27: #{tpu_custom_call.1} parent=5 // pred_region
        %s179 = ssub.s32 %s17, 1
        %s180 = sand.u32 %s44, 1
        %s181 = scalar_lea.sflag [#allocation3], %s180
        %s182 = sand.u32 %s44, 1
        %s183 = smul.addr %s182, 32
        %s184 = scalar_lea.vmem [#allocation2], %s183
        // Predicated region
        $region29: #{tpu_custom_call.1} parent=27 // pred_check
          %p185 = pneg %p57
        $region30: #{tpu_custom_call.1} parent=27 // pred_check_branch
          %187 = sbr.rel (%p185) target = $region32
        $region31: #{tpu_custom_call.1} parent=27 // pred_region
          %188 = dma.done %s181, 512
        $region32: #{tpu_custom_call.1} parent=27 // pred_fallthru
          _
        %s189 = sand.u32 %s70, 1
        %s190 = scalar_lea.sflag [#allocation6], %s189
        %s191 = sand.u32 %s70, 1
        %s192 = smul.addr %s191, 32
        %s193 = scalar_lea.vmem [#allocation5], %s192
        // Predicated region
        $region33: #{tpu_custom_call.1} parent=27 // pred_check
          %p194 = pneg %p83
        $region34: #{tpu_custom_call.1} parent=27 // pred_check_branch
          %196 = sbr.rel (%p194) target = $region36
        $region35: #{tpu_custom_call.1} parent=27 // pred_region
          %197 = dma.done %s190, 512
        $region36: #{tpu_custom_call.1} parent=27 // pred_fallthru
          _
        %s198 = sand.u32 %s44, 1
        %s199 = scalar_lea.sflag [#allocation3], %s198
        %s200 = sand.u32 %s44, 1
        %s201 = smul.addr %s200, 32
        %s202 = scalar_lea.vmem [#allocation2], %s201
        %p203 = pneg %p57
        %p204 = pneg %p54
        %s205 = sand.u32 %s70, 1
        %s206 = scalar_lea.sflag [#allocation6], %s205
        %s207 = sand.u32 %s70, 1
        %s208 = smul.addr %s207, 32
        %s209 = scalar_lea.vmem [#allocation5], %s208
        %p210 = pneg %p83
        %p211 = pneg %p80
        %p212 = pneg %p111
        %p213 = pneg %p108
        %s214 = sand.u32 %s98, 1
        %s215 = scalar_lea.sflag [#allocation4], %s214
        %s216 = sand.u32 %s98, 1
        %s217 = smul.addr %s216, 32
        %s218 = scalar_lea.vmem [#allocation7], %s217
        %s219 = smul.u32 4, %s26
        %s220 = smul.u32 4, %s26
        %s221 = smul.u32 4, %s26
        %v222 = vld [vmem:[%s184] sm:$0xff]
        %v223 = vld [vmem:[%s184 + $0x8] sm:$0xff]
        %v224 = vld [vmem:[%s184 + $0x10] sm:$0xff]
        %v225 = vld [vmem:[%s184 + $0x18] sm:$0xff]
        %vm226 = vcmask 64512
        %v227 = vsel %vm226, %v222, -inf
        %228 = vmax.xlane.f32.xlu0 %v227
        %v229 = vpop.xlane.xlu0 %228
        %v230 = vsel %vm226, %v223, -inf
        %231 = vmax.xlane.f32.xlu0 %v230
        %v232 = vpop.xlane.xlu0 %231
        %v233 = vsel %vm226, %v224, -inf
        %234 = vmax.xlane.f32.xlu0 %v233
        %v235 = vpop.xlane.xlu0 %234
        %v236 = vsel %vm226, %v225, -inf
        %237 = vmax.xlane.f32.xlu0 %v236
        %v238 = vpop.xlane.xlu0 %237
        %v239 = vsub.f32 %v222, %v229
        %v240 = vsub.f32 %v223, %v232
        %v241 = vsub.f32 %v224, %v235
        %v242 = vsub.f32 %v225, %v238
        %v243 = vmul.f32 %v239, 1.442695
        %v244 = vpow.pop %v243
        %v245 = vmul.f32 %v240, 1.442695
        %v246 = vpow.pop %v245
        %v247 = vmul.f32 %v241, 1.442695
        %v248 = vpow.pop %v247
        %v249 = vmul.f32 %v242, 1.442695
        %v250 = vpow.pop %v249
        %v251 = vsel %vm226, %v244, 0.0
        %252 = vadd.xlane.f32.xlu0 %v251
        %v253 = vpop.xlane.xlu0 %252
        %v254 = vsel %vm226, %v246, 0.0
        %255 = vadd.xlane.f32.xlu0 %v254
        %v256 = vpop.xlane.xlu0 %255
        %v257 = vsel %vm226, %v248, 0.0
        %258 = vadd.xlane.f32.xlu0 %v257
        %v259 = vpop.xlane.xlu0 %258
        %v260 = vsel %vm226, %v250, 0.0
        %261 = vadd.xlane.f32.xlu0 %v260
        %v262 = vpop.xlane.xlu0 %261
        %v263 = vrcp.pop %v253
        %v264 = vrcp.pop %v256
        %v265 = vrcp.pop %v259
        %v266 = vrcp.pop %v262
        %v267 = vld [vmem:[%s193] sm:$0xff]
        %v269 = vsel %vm226, %v244, 0
        %271 = vmatprep.subr.mxu0 0.0
        %272 = vmatpush1.msra.mxu0 %v267
        %273 = vmatprep.subr.mxu0 0.0
        %274 = vmatpush1.msra.mxu0 0.0
        %275 = vmatprep.subr.mxu0 0.0
        %276 = vmatpush1.msra.mxu0 0.0
        %277 = vmatprep.subr.mxu0 0.0
        %278 = vmatpush1.msra.mxu0 0.0
        %279 = vmatprep.subr.mxu0 0.0
        %280 = vmatpush1.msra.mxu0 0.0
        %281 = vmatprep.subr.mxu0 0.0
        %282 = vmatpush1.msra.mxu0 0.0
        %283 = vmatprep.subr.mxu0 0.0
        %284 = vmatpush1.msra.mxu0 0.0
        %285 = vmatprep.subr.mxu0 0.0
        %286 = vmatpush1.msra.mxu0 0.0
        %287 = vmatprep.subr.mxu0 0.0
        %288 = vmatpush1.msra.mxu0 0.0
        %289 = vmatprep.subr.mxu0 0.0
        %290 = vmatpush1.msra.mxu0 0.0
        %291 = vmatprep.subr.mxu0 0.0
        %292 = vmatpush1.msra.mxu0 0.0
        %293 = vmatprep.subr.mxu0 0.0
        %294 = vmatpush1.msra.mxu0 0.0
        %295 = vmatprep.subr.mxu0 0.0
        %296 = vmatpush1.msra.mxu0 0.0
        %297 = vmatprep.subr.mxu0 0.0
        %298 = vmatpush1.msra.mxu0 0.0
        %299 = vmatprep.subr.mxu0 0.0
        %300 = vmatpush1.msra.mxu0 0.0
        %301 = vmatprep.subr.mxu0 0.0
        %302 = vmatpush1.msra.mxu0 0.0
        %303 = vmatprep.subr.mxu0 0.0
        %304 = vmatpush1.msra.mxu0 0.0
        %305 = vmatprep.subr.mxu0 0.0
        %306 = vmatpush1.msra.mxu0 0.0
        %307 = vmatprep.subr.mxu0 0.0
        %308 = vmatpush1.msra.mxu0 0.0
        %309 = vmatprep.subr.mxu0 0.0
        %310 = vmatpush1.msra.mxu0 0.0
        %311 = vmatprep.subr.mxu0 0.0
        %312 = vmatpush1.msra.mxu0 0.0
        %313 = vmatprep.subr.mxu0 0.0
        %314 = vmatpush1.msra.mxu0 0.0
        %315 = vmatprep.subr.mxu0 0.0
        %316 = vmatpush1.msra.mxu0 0.0
        %317 = vmatprep.subr.mxu0 0.0
        %318 = vmatpush1.msra.mxu0 0.0
        %319 = vmatprep.subr.mxu0 0.0
        %320 = vmatpush1.msra.mxu0 0.0
        %321 = vmatprep.subr.mxu0 0.0
        %322 = vmatpush1.msra.mxu0 0.0
        %323 = vmatprep.subr.mxu0 0.0
        %324 = vmatpush1.msra.mxu0 0.0
        %325 = vmatprep.subr.mxu0 0.0
        %326 = vmatpush1.msra.mxu0 0.0
        %327 = vmatprep.subr.mxu0 0.0
        %328 = vmatpush1.msra.mxu0 0.0
        %329 = vmatprep.subr.mxu0 0.0
        %330 = vmatpush1.msra.mxu0 0.0
        %331 = vmatprep.subr.mxu0 0.0
        %332 = vmatpush1.msra.mxu0 0.0
        %333 = vmatprep.subr.mxu0 0.0
        %334 = vmatpush1.msra.mxu0 0.0
        %335 = vmatprep.mubr.f32.mxu0 0.0
        %336 = vmatmul.mubr.f32.gmra.mrb[0].mxu0 %v269
        %v337 = vpop.f32.mrb[0].mxu0
        %v338 = vadd.f32 0.0, %v337
        %v339 = vpop.f32.mrb[0].mxu0
        %340 = vdwg.mxu0
        %v341 = vmul.f32 %v338, %v263
        %vm342 = vcmask 261120
        %343 = vst.msk [vmem:[%s218] sm:$0xff] %vm342, %v341
        %s344 = scalar_lea.vmem %s193, 8 [#allocation5]
        %v345 = vld [vmem:[%s344] sm:$0xff]
        %v347 = vsel %vm226, %v246, 0
        %349 = vmatprep.subr.mxu0 0.0
        %350 = vmatpush1.msra.mxu0 %v345
        %351 = vmatprep.subr.mxu0 0.0
        %352 = vmatpush1.msra.mxu0 0.0
        %353 = vmatprep.subr.mxu0 0.0
        %354 = vmatpush1.msra.mxu0 0.0
        %355 = vmatprep.subr.mxu0 0.0
        %356 = vmatpush1.msra.mxu0 0.0
        %357 = vmatprep.subr.mxu0 0.0
        %358 = vmatpush1.msra.mxu0 0.0
        %359 = vmatprep.subr.mxu0 0.0
        %360 = vmatpush1.msra.mxu0 0.0
        %361 = vmatprep.subr.mxu0 0.0
        %362 = vmatpush1.msra.mxu0 0.0
        %363 = vmatprep.subr.mxu0 0.0
        %364 = vmatpush1.msra.mxu0 0.0
        %365 = vmatprep.subr.mxu0 0.0
        %366 = vmatpush1.msra.mxu0 0.0
        %367 = vmatprep.subr.mxu0 0.0
        %368 = vmatpush1.msra.mxu0 0.0
        %369 = vmatprep.subr.mxu0 0.0
        %370 = vmatpush1.msra.mxu0 0.0
        %371 = vmatprep.subr.mxu0 0.0
        %372 = vmatpush1.msra.mxu0 0.0
        %373 = vmatprep.subr.mxu0 0.0
        %374 = vmatpush1.msra.mxu0 0.0
        %375 = vmatprep.subr.mxu0 0.0
        %376 = vmatpush1.msra.mxu0 0.0
        %377 = vmatprep.subr.mxu0 0.0
        %378 = vmatpush1.msra.mxu0 0.0
        %379 = vmatprep.subr.mxu0 0.0
        %380 = vmatpush1.msra.mxu0 0.0
        %381 = vmatprep.subr.mxu0 0.0
        %382 = vmatpush1.msra.mxu0 0.0
        %383 = vmatprep.subr.mxu0 0.0
        %384 = vmatpush1.msra.mxu0 0.0
        %385 = vmatprep.subr.mxu0 0.0
        %386 = vmatpush1.msra.mxu0 0.0
        %387 = vmatprep.subr.mxu0 0.0
        %388 = vmatpush1.msra.mxu0 0.0
        %389 = vmatprep.subr.mxu0 0.0
        %390 = vmatpush1.msra.mxu0 0.0
        %391 = vmatprep.subr.mxu0 0.0
        %392 = vmatpush1.msra.mxu0 0.0
        %393 = vmatprep.subr.mxu0 0.0
        %394 = vmatpush1.msra.mxu0 0.0
        %395 = vmatprep.subr.mxu0 0.0
        %396 = vmatpush1.msra.mxu0 0.0
        %397 = vmatprep.subr.mxu0 0.0
        %398 = vmatpush1.msra.mxu0 0.0
        %399 = vmatprep.subr.mxu0 0.0
        %400 = vmatpush1.msra.mxu0 0.0
        %401 = vmatprep.subr.mxu0 0.0
        %402 = vmatpush1.msra.mxu0 0.0
        %403 = vmatprep.subr.mxu0 0.0
        %404 = vmatpush1.msra.mxu0 0.0
        %405 = vmatprep.subr.mxu0 0.0
        %406 = vmatpush1.msra.mxu0 0.0
        %407 = vmatprep.subr.mxu0 0.0
        %408 = vmatpush1.msra.mxu0 0.0
        %409 = vmatprep.subr.mxu0 0.0
        %410 = vmatpush1.msra.mxu0 0.0
        %411 = vmatprep.subr.mxu0 0.0
        %412 = vmatpush1.msra.mxu0 0.0
        %413 = vmatprep.mubr.f32.mxu0 0.0
        %414 = vmatmul.mubr.f32.gmra.mrb[0].mxu0 %v347
        %v415 = vpop.f32.mrb[0].mxu0
        %v416 = vadd.f32 0.0, %v415
        %v417 = vpop.f32.mrb[0].mxu0
        %418 = vdwg.mxu0
        %v419 = vmul.f32 %v416, %v264
        %s420 = scalar_lea.vmem %s218, 8 [#allocation7]
        %421 = vst.msk [vmem:[%s420] sm:$0xff] %vm342, %v419
        %s422 = scalar_lea.vmem %s193, 16 [#allocation5]
        %v423 = vld [vmem:[%s422] sm:$0xff]
        %v425 = vsel %vm226, %v248, 0
        %427 = vmatprep.subr.mxu0 0.0
        %428 = vmatpush1.msra.mxu0 %v423
        %429 = vmatprep.subr.mxu0 0.0
        %430 = vmatpush1.msra.mxu0 0.0
        %431 = vmatprep.subr.mxu0 0.0
        %432 = vmatpush1.msra.mxu0 0.0
        %433 = vmatprep.subr.mxu0 0.0
        %434 = vmatpush1.msra.mxu0 0.0
        %435 = vmatprep.subr.mxu0 0.0
        %436 = vmatpush1.msra.mxu0 0.0
        %437 = vmatprep.subr.mxu0 0.0
        %438 = vmatpush1.msra.mxu0 0.0
        %439 = vmatprep.subr.mxu0 0.0
        %440 = vmatpush1.msra.mxu0 0.0
        %441 = vmatprep.subr.mxu0 0.0
        %442 = vmatpush1.msra.mxu0 0.0
        %443 = vmatprep.subr.mxu0 0.0
        %444 = vmatpush1.msra.mxu0 0.0
        %445 = vmatprep.subr.mxu0 0.0
        %446 = vmatpush1.msra.mxu0 0.0
        %447 = vmatprep.subr.mxu0 0.0
        %448 = vmatpush1.msra.mxu0 0.0
        %449 = vmatprep.subr.mxu0 0.0
        %450 = vmatpush1.msra.mxu0 0.0
        %451 = vmatprep.subr.mxu0 0.0
        %452 = vmatpush1.msra.mxu0 0.0
        %453 = vmatprep.subr.mxu0 0.0
        %454 = vmatpush1.msra.mxu0 0.0
        %455 = vmatprep.subr.mxu0 0.0
        %456 = vmatpush1.msra.mxu0 0.0
        %457 = vmatprep.subr.mxu0 0.0
        %458 = vmatpush1.msra.mxu0 0.0
        %459 = vmatprep.subr.mxu0 0.0
        %460 = vmatpush1.msra.mxu0 0.0
        %461 = vmatprep.subr.mxu0 0.0
        %462 = vmatpush1.msra.mxu0 0.0
        %463 = vmatprep.subr.mxu0 0.0
        %464 = vmatpush1.msra.mxu0 0.0
        %465 = vmatprep.subr.mxu0 0.0
        %466 = vmatpush1.msra.mxu0 0.0
        %467 = vmatprep.subr.mxu0 0.0
        %468 = vmatpush1.msra.mxu0 0.0
        %469 = vmatprep.subr.mxu0 0.0
        %470 = vmatpush1.msra.mxu0 0.0
        %471 = vmatprep.subr.mxu0 0.0
        %472 = vmatpush1.msra.mxu0 0.0
        %473 = vmatprep.subr.mxu0 0.0
        %474 = vmatpush1.msra.mxu0 0.0
        %475 = vmatprep.subr.mxu0 0.0
        %476 = vmatpush1.msra.mxu0 0.0
        %477 = vmatprep.subr.mxu0 0.0
        %478 = vmatpush1.msra.mxu0 0.0
        %479 = vmatprep.subr.mxu0 0.0
        %480 = vmatpush1.msra.mxu0 0.0
        %481 = vmatprep.subr.mxu0 0.0
        %482 = vmatpush1.msra.mxu0 0.0
        %483 = vmatprep.subr.mxu0 0.0
        %484 = vmatpush1.msra.mxu0 0.0
        %485 = vmatprep.subr.mxu0 0.0
        %486 = vmatpush1.msra.mxu0 0.0
        %487 = vmatprep.subr.mxu0 0.0
        %488 = vmatpush1.msra.mxu0 0.0
        %489 = vmatprep.subr.mxu0 0.0
        %490 = vmatpush1.msra.mxu0 0.0
        %491 = vmatprep.mubr.f32.mxu0 0.0
        %492 = vmatmul.mubr.f32.gmra.mrb[0].mxu0 %v425
        %v493 = vpop.f32.mrb[0].mxu0
        %v494 = vadd.f32 0.0, %v493
        %v495 = vpop.f32.mrb[0].mxu0
        %496 = vdwg.mxu0
        %v497 = vmul.f32 %v494, %v265
        %s498 = scalar_lea.vmem %s218, 16 [#allocation7]
        %499 = vst.msk [vmem:[%s498] sm:$0xff] %vm342, %v497
        %s500 = scalar_lea.vmem %s193, 24 [#allocation5]
        %v501 = vld [vmem:[%s500] sm:$0xff]
        %v503 = vsel %vm226, %v250, 0
        %505 = vmatprep.subr.mxu0 0.0
        %506 = vmatpush1.msra.mxu0 %v501
        %507 = vmatprep.subr.mxu0 0.0
        %508 = vmatpush1.msra.mxu0 0.0
        %509 = vmatprep.subr.mxu0 0.0
        %510 = vmatpush1.msra.mxu0 0.0
        %511 = vmatprep.subr.mxu0 0.0
        %512 = vmatpush1.msra.mxu0 0.0
        %513 = vmatprep.subr.mxu0 0.0
        %514 = vmatpush1.msra.mxu0 0.0
        %515 = vmatprep.subr.mxu0 0.0
        %516 = vmatpush1.msra.mxu0 0.0
        %517 = vmatprep.subr.mxu0 0.0
        %518 = vmatpush1.msra.mxu0 0.0
        %519 = vmatprep.subr.mxu0 0.0
        %520 = vmatpush1.msra.mxu0 0.0
        %521 = vmatprep.subr.mxu0 0.0
        %522 = vmatpush1.msra.mxu0 0.0
        %523 = vmatprep.subr.mxu0 0.0
        %524 = vmatpush1.msra.mxu0 0.0
        %525 = vmatprep.subr.mxu0 0.0
        %526 = vmatpush1.msra.mxu0 0.0
        %527 = vmatprep.subr.mxu0 0.0
        %528 = vmatpush1.msra.mxu0 0.0
        %529 = vmatprep.subr.mxu0 0.0
        %530 = vmatpush1.msra.mxu0 0.0
        %531 = vmatprep.subr.mxu0 0.0
        %532 = vmatpush1.msra.mxu0 0.0
        %533 = vmatprep.subr.mxu0 0.0
        %534 = vmatpush1.msra.mxu0 0.0
        %535 = vmatprep.subr.mxu0 0.0
        %536 = vmatpush1.msra.mxu0 0.0
        %537 = vmatprep.subr.mxu0 0.0
        %538 = vmatpush1.msra.mxu0 0.0
        %539 = vmatprep.subr.mxu0 0.0
        %540 = vmatpush1.msra.mxu0 0.0
        %541 = vmatprep.subr.mxu0 0.0
        %542 = vmatpush1.msra.mxu0 0.0
        %543 = vmatprep.subr.mxu0 0.0
        %544 = vmatpush1.msra.mxu0 0.0
        %545 = vmatprep.subr.mxu0 0.0
        %546 = vmatpush1.msra.mxu0 0.0
        %547 = vmatprep.subr.mxu0 0.0
        %548 = vmatpush1.msra.mxu0 0.0
        %549 = vmatprep.subr.mxu0 0.0
        %550 = vmatpush1.msra.mxu0 0.0
        %551 = vmatprep.subr.mxu0 0.0
        %552 = vmatpush1.msra.mxu0 0.0
        %553 = vmatprep.subr.mxu0 0.0
        %554 = vmatpush1.msra.mxu0 0.0
        %555 = vmatprep.subr.mxu0 0.0
        %556 = vmatpush1.msra.mxu0 0.0
        %557 = vmatprep.subr.mxu0 0.0
        %558 = vmatpush1.msra.mxu0 0.0
        %559 = vmatprep.subr.mxu0 0.0
        %560 = vmatpush1.msra.mxu0 0.0
        %561 = vmatprep.subr.mxu0 0.0
        %562 = vmatpush1.msra.mxu0 0.0
        %563 = vmatprep.subr.mxu0 0.0
        %564 = vmatpush1.msra.mxu0 0.0
        %565 = vmatprep.subr.mxu0 0.0
        %566 = vmatpush1.msra.mxu0 0.0
        %567 = vmatprep.subr.mxu0 0.0
        %568 = vmatpush1.msra.mxu0 0.0
        %569 = vmatprep.mubr.f32.mxu0 0.0
        %570 = vmatmul.mubr.f32.gmra.mrb[0].mxu0 %v503
        %v571 = vpop.f32.mrb[0].mxu0
        %v572 = vadd.f32 0.0, %v571
        %v573 = vpop.f32.mrb[0].mxu0
        %574 = vdwg.mxu0
        %v575 = vmul.f32 %v572, %v266
        %s576 = scalar_lea.vmem %s218, 24 [#allocation7]
        %577 = vst.msk [vmem:[%s576] sm:$0xff] %vm342, %v575
        %s578 = sand.u32 %s98, 1
        %s579 = scalar_lea.sflag [#allocation4], %s578
        %s580 = sand.u32 %s98, 1
        %s581 = smul.addr %s580, 32
        %s582 = scalar_lea.vmem [#allocation7], %s581
        // Predicated region
        $region37: #{tpu_custom_call.1} parent=27 // pred_check
          %p583 = pneg %p108
        $region38: #{tpu_custom_call.1} parent=27 // pred_check_branch
          %585 = sbr.rel (%p583) target = $region40
        $region39: #{tpu_custom_call.1} parent=27 // pred_region
          %s586 = smul.u32 4, %s26
          %s588 = ssub.s32 512, 512
          %589 = vsyncadd %s579, %s588
          %s590 = sadd.s32 %s27, %s586
          %s591 = smul.addr %s590, 128
          %s592 = scalar_lea.hbm %s2, %s591
          %s593 = sshll.u32 %s582, 4
          %s594 = int_to_ptr.vmem [resolvable:$true] %s593
          %599 = dma.vmem_to_hbm [thread:$0]  %s594, 512, %s592, %s579, 128, 128, 8
        $region40: #{tpu_custom_call.1} parent=27 // pred_fallthru
          _
      $region28: #{tpu_custom_call.1} parent=5 // pred_fallthru
        _
      %p600 = scmp.le.s32.totalorder 2, %s17
      // Predicated region
      $region41: #{tpu_custom_call.1} parent=5 // pred_check
        %p601 = pneg %p600
      $region42: #{tpu_custom_call.1} parent=5 // pred_check_branch
        %603 = sbr.rel (%p601) target = $region44
      $region43: #{tpu_custom_call.1} parent=5 // pred_region
        %s604 = ssub.s32 %s17, 2
        // Predicated region
        $region45: #{tpu_custom_call.1} parent=43 // pred_check
          %p605 = pneg %p114
        $region46: #{tpu_custom_call.1} parent=43 // pred_check_branch
          %607 = sbr.rel (%p605) target = $region48
        $region47: #{tpu_custom_call.1} parent=43 // pred_region
          %s608 = sand.u32 %s99, 1
          %s609 = scalar_lea.sflag [#allocation4], %s608
          %s610 = sand.u32 %s99, 1
          %s611 = smul.addr %s610, 32
          %s612 = scalar_lea.vmem [#allocation7], %s611
          %613 = dma.done %s609, 512
        $region48: #{tpu_custom_call.1} parent=43 // pred_fallthru
          _
      $region44: #{tpu_custom_call.1} parent=5 // pred_fallthru
        _
    $region6: #{tpu_custom_call.1} parent=1 // loop_footer
      %s21 = sadd.s32 1, %s17
    $region7: #{tpu_custom_call.1} parent=1 // loop_footer_branch
      %16 = sbr.rel target = $region3
    $region8: #{tpu_custom_call.1} parent=1 // loop_exit
      _
    %614 = vsyncpa [#allocation3], 1
    %s615 = scalar_lea.sflag [#allocation3], 1
    %616 = vsyncpa %s615, 1
    %617 = vsyncpa [#allocation6], 1
    %s618 = scalar_lea.sflag [#allocation6], 1
    %619 = vsyncpa %s618, 1
    %620 = vsyncpa [#allocation4], 1
    %s621 = scalar_lea.sflag [#allocation4], 1
    %622 = vsyncpa %s621, 1

</llo_original>
